<compile_context>
chip_gen: v7x
topology: tpu7x:2x2x1
jax: 0.10.0
libtpu: 0.0.40
codegen_flags: <defaults>
</compile_context>

<pallas_src>
import math

import jax
import jax.numpy as jnp
from jax import lax
from jax.experimental import pallas as pl
from jax.experimental.pallas import tpu as pltpu


def _xlogy_const(a: float) -> float:
    """a*log(a) with the 0*log(0) := 0 convention, on Python floats."""
    return a * math.log(a) if a > 0.0 else 0.0


def _out_width(V: int) -> int:
    """Lane-dense partial width; folds huge vocabs into <= 2048 lanes."""
    if V <= 2048:
        return V
    for w in (2048, 1024, 512, 256, 128):
        if V % w == 0:
            return w
    return V  # odd vocab width: fall back to full-width partials


def _make_kernel(V, tm, padding_idx, confidence, smooth_val, w_out):
    # Everything closed over here is a Python int/float -> literals in the
    # kernel trace (no captured jnp constants -> no pallas_call const error).
    n_groups = tm // 8
    col_starts = tuple(range(0, V, w_out))  # each chunk is exactly w_out wide

    def kernel(x_ref, tgt_ref, out_ref):
        acc = jnp.zeros((8, w_out), jnp.float32)
        for c0 in col_starts:                       # column chunks (usually 1)
            # Hoisted per-chunk constants: column ids and the smoothing value
            # with the padding column already zeroed.
            col = lax.broadcasted_iota(jnp.int32, (8, w_out), 1) + c0
            sm_cols = jnp.where(col == padding_idx, 0.0, smooth_val)
            chunk_acc = jnp.zeros((8, w_out), jnp.float32)
            for g in range(n_groups):               # 8-row sublane groups
                r0 = g * 8
                xg = x_ref[pl.ds(r0, 8), pl.ds(c0, w_out)].astype(jnp.float32)
                tg = tgt_ref[pl.ds(r0, 8), :]                     # (8, 1) int32
                row_ok = tg != padding_idx                        # also masks rows >= N
                conf_row = jnp.where(row_ok, confidence, 0.0)     # (8, 1)
                factor = jnp.where(col == tg, conf_row, sm_cols)  # true_dist values
                # Final select (not a multiply) so garbage/NaN x in rows past N
                # never leaks into valid lanes of the sum.
                chunk_acc = chunk_acc + jnp.where(row_ok, factor * xg, 0.0)
            acc = acc + chunk_acc
        out_ref[...] = acc

    return kernel


def label_smoothing_loss(x, target, *, size, padding_idx, smoothing,
                         max_tile_bytes=8 * 1024 * 1024):
    """Scalar loss identical to the PyTorch LabelSmoothing module's forward."""
    N, V = x.shape
    assert V == size
    confidence = 1.0 - smoothing
    smooth_val = smoothing / (size - 2)

    # Row tile: largest multiple of 8 whose x slab stays under max_tile_bytes
    # (double-buffered ~16 MiB, comfortable on v5e/v6e/v7x), capped at 512 rows
    # to bound the unrolled in-kernel group loop.  tm <= N (when N >= 8) so
    # only the last row tile overruns; the overrun rows are masked via the
    # padded target.
    itemsize = jnp.dtype(x.dtype).itemsize
    rows_cap = max(8, (max_tile_bytes // max(V * itemsize, 1)) // 8 * 8)
    rows_floor8 = (N // 8) * 8
    tm = max(8, min(512, rows_cap, rows_floor8 if rows_floor8 > 0 else 8))

    num_tiles = -(-N // tm)
    Np = num_tiles * tm

    # Only the tiny target vector is padded/copied; padded rows carry
    # padding_idx so they (and the garbage x rows of a ragged last tile)
    # contribute exactly zero.  x itself is streamed untouched from HBM.
    tgtp = jnp.pad(target.astype(jnp.int32), (0, Np - N),
                   constant_values=padding_idx).reshape(Np, 1)

    w_out = _out_width(V)
    kernel = _make_kernel(V, tm, padding_idx, confidence, smooth_val, w_out)

    partials = pl.pallas_call(
        kernel,
        out_shape=jax.ShapeDtypeStruct((num_tiles * 8, w_out), jnp.float32),
        grid=(num_tiles,),
        in_specs=[
            pl.BlockSpec((tm, V), lambda i: (i, 0)),
            pl.BlockSpec((tm, 1), lambda i: (i, 0)),
        ],
        out_specs=pl.BlockSpec((8, w_out), lambda i: (i, 0)),
        compiler_params=pltpu.CompilerParams(
            dimension_semantics=("parallel",),   # independent row tiles (megacore)
            vmem_limit_bytes=48 * 1024 * 1024,
        ),
    )(x, tgtp)

    # sum(true_dist * x): tiny (num_tiles*8, w_out) reduce left to XLA.
    dot_sum = jnp.sum(partials)
    # sum(xlogy(true_dist, true_dist)): compile-time constant per non-pad row.
    ent_const = _xlogy_const(confidence) + (size - 2) * _xlogy_const(smooth_val)
    n_rows = jnp.sum(target != padding_idx).astype(jnp.float32)
    # TODO(synk): the PyTorch module also caches self.true_dist; only the scalar loss is returned.
    return n_rows * ent_const - dot_sum


def _reference(x, target, *, size, padding_idx, smoothing):
    N, V = x.shape
    confidence = 1.0 - smoothing
    smooth_val = smoothing / (size - 2)
    true_dist = jnp.full((N, V), smooth_val, dtype=jnp.float32)
    true_dist = true_dist.at[jnp.arange(N), target].set(confidence)
    true_dist = true_dist.at[:, padding_idx].set(0.0)
    true_dist = jnp.where((target == padding_idx)[:, None], 0.0, true_dist)
    xlogy = jnp.where(true_dist > 0,
                      true_dist * jnp.log(jnp.where(true_dist > 0, true_dist, 1.0)),
                      0.0)
    return jnp.sum(xlogy - true_dist * x)


if __name__ == "__main__":
    N, SIZE = 50, 200            # 50 tokens, vocab 200 (exercises ragged row tile)
    PADDING_IDX = 0
    SMOOTHING = 0.1

    key = jax.random.PRNGKey(0)
    k1, k2 = jax.random.split(key)
    logits = jax.random.normal(k1, (N, SIZE), dtype=jnp.float32)
    x = jax.nn.log_softmax(logits, axis=-1)                      # module expects log-probs
    target = jax.random.randint(k2, (N,), 0, SIZE, dtype=jnp.int32)
    target = target.at[3].set(PADDING_IDX)                       # include padding tokens
    target = target.at[17].set(PADDING_IDX)

    loss = label_smoothing_loss(x, target, size=SIZE,
                                padding_idx=PADDING_IDX, smoothing=SMOOTHING)
    loss = jax.block_until_ready(loss)

    ref = _reference(x, target, size=SIZE,
                     padding_idx=PADDING_IDX, smoothing=SMOOTHING)
    assert jnp.allclose(loss, ref, rtol=1e-5, atol=1e-4), (loss, ref)
    print("KERNEL_OK")
</pallas_src>

<mosaic_0001>
module attributes {stable_mosaic.version = 11 : i64} {
  func.func @kernel(%arg0: i32, %arg1: memref<48x200xf32, #tpu.memory_space<vmem>>, %arg2: memref<48x1xi32, #tpu.memory_space<vmem>>, %arg3: memref<8x200xf32, #tpu.memory_space<vmem>>) attributes {dimension_semantics = [#tpu.dimension_semantics<parallel>], iteration_bounds = array<i64: 2>, scalar_prefetch = 0 : i64, scratch_operands = 0 : i64, tpu.core_type = #tpu.core_type<tc>, window_params = [{transform_indices = @transform_0, window_bounds = array<i64: 48, 200>}, {transform_indices = @transform_1, window_bounds = array<i64: 48, 1>}, {transform_indices = @transform_2, window_bounds = array<i64: 8, 200>}]} {
    %cst = arith.constant 0.000000e+00 : f32
    %0 = vector.broadcast %cst : f32 to vector<8x200xf32>
    %1 = tpu.iota {dimensions = array<i32: 1>} : vector<8x200xi32>
    %c0_i32 = arith.constant 0 : i32
    %2 = vector.broadcast %c0_i32 : i32 to vector<8x200xi32>
    %3 = arith.addi %1, %2 : vector<8x200xi32>
    %c0_i32_0 = arith.constant 0 : i32
    %4 = vector.broadcast %c0_i32_0 : i32 to vector<8x200xi32>
    %5 = arith.cmpi eq, %3, %4 : vector<8x200xi32>
    %cst_1 = arith.constant 0.000000e+00 : f32
    %cst_2 = arith.constant 5.05050528E-4 : f32
    %6 = vector.broadcast %cst_1 : f32 to vector<8x200xf32>
    %7 = vector.broadcast %cst_2 : f32 to vector<8x200xf32>
    %8 = arith.select %5, %6, %7 : vector<8x200xi1>, vector<8x200xf32>
    %cst_3 = arith.constant 0.000000e+00 : f32
    %9 = vector.broadcast %cst_3 : f32 to vector<8x200xf32>
    %c0 = arith.constant 0 : index
    %c0_4 = arith.constant 0 : index
    %10 = vector.load %arg1[%c0, %c0_4] : memref<48x200xf32, #tpu.memory_space<vmem>>, vector<8x200xf32>
    %c0_5 = arith.constant 0 : index
    %c0_6 = arith.constant 0 : index
    %11 = vector.load %arg2[%c0_5, %c0_6] : memref<48x1xi32, #tpu.memory_space<vmem>>, vector<8x1xi32>
    %c0_i32_7 = arith.constant 0 : i32
    %12 = vector.broadcast %c0_i32_7 : i32 to vector<8x1xi32>
    %13 = arith.cmpi ne, %11, %12 : vector<8x1xi32>
    %cst_8 = arith.constant 0.899999976 : f32
    %cst_9 = arith.constant 0.000000e+00 : f32
    %14 = vector.broadcast %cst_8 : f32 to vector<8x1xf32>
    %15 = vector.broadcast %cst_9 : f32 to vector<8x1xf32>
    %16 = arith.select %13, %14, %15 : vector<8x1xi1>, vector<8x1xf32>
    %17 = vector.broadcast %11 : vector<8x1xi32> to vector<8x200xi32>
    %18 = arith.cmpi eq, %3, %17 : vector<8x200xi32>
    %19 = vector.shape_cast %16 : vector<8x1xf32> to vector<8x1xf32>
    %20 = vector.broadcast %19 : vector<8x1xf32> to vector<8x200xf32>
    %21 = arith.select %18, %20, %8 : vector<8x200xi1>, vector<8x200xf32>
    %22 = arith.mulf %21, %10 : vector<8x200xf32>
    %cst_10 = arith.constant 0.000000e+00 : f32
    %23 = vector.shape_cast %13 : vector<8x1xi1> to vector<8x1xi1>
    %24 = vector.broadcast %23 : vector<8x1xi1> to vector<8x200xi1>
    %25 = vector.broadcast %cst_10 : f32 to vector<8x200xf32>
    %26 = arith.select %24, %22, %25 : vector<8x200xi1>, vector<8x200xf32>
    %27 = arith.addf %9, %26 : vector<8x200xf32>
    %c8 = arith.constant 8 : index
    %c0_11 = arith.constant 0 : index
    %28 = vector.load %arg1[%c8, %c0_11] : memref<48x200xf32, #tpu.memory_space<vmem>>, vector<8x200xf32>
    %c8_12 = arith.constant 8 : index
    %c0_13 = arith.constant 0 : index
    %29 = vector.load %arg2[%c8_12, %c0_13] : memref<48x1xi32, #tpu.memory_space<vmem>>, vector<8x1xi32>
    %c0_i32_14 = arith.constant 0 : i32
    %30 = vector.broadcast %c0_i32_14 : i32 to vector<8x1xi32>
    %31 = arith.cmpi ne, %29, %30 : vector<8x1xi32>
    %cst_15 = arith.constant 0.899999976 : f32
    %cst_16 = arith.constant 0.000000e+00 : f32
    %32 = vector.broadcast %cst_15 : f32 to vector<8x1xf32>
    %33 = vector.broadcast %cst_16 : f32 to vector<8x1xf32>
    %34 = arith.select %31, %32, %33 : vector<8x1xi1>, vector<8x1xf32>
    %35 = vector.broadcast %29 : vector<8x1xi32> to vector<8x200xi32>
    %36 = arith.cmpi eq, %3, %35 : vector<8x200xi32>
    %37 = vector.shape_cast %34 : vector<8x1xf32> to vector<8x1xf32>
    %38 = vector.broadcast %37 : vector<8x1xf32> to vector<8x200xf32>
    %39 = arith.select %36, %38, %8 : vector<8x200xi1>, vector<8x200xf32>
    %40 = arith.mulf %39, %28 : vector<8x200xf32>
    %cst_17 = arith.constant 0.000000e+00 : f32
    %41 = vector.shape_cast %31 : vector<8x1xi1> to vector<8x1xi1>
    %42 = vector.broadcast %41 : vector<8x1xi1> to vector<8x200xi1>
    %43 = vector.broadcast %cst_17 : f32 to vector<8x200xf32>
    %44 = arith.select %42, %40, %43 : vector<8x200xi1>, vector<8x200xf32>
    %45 = arith.addf %27, %44 : vector<8x200xf32>
    %c16 = arith.constant 16 : index
    %c0_18 = arith.constant 0 : index
    %46 = vector.load %arg1[%c16, %c0_18] : memref<48x200xf32, #tpu.memory_space<vmem>>, vector<8x200xf32>
    %c16_19 = arith.constant 16 : index
    %c0_20 = arith.constant 0 : index
    %47 = vector.load %arg2[%c16_19, %c0_20] : memref<48x1xi32, #tpu.memory_space<vmem>>, vector<8x1xi32>
    %c0_i32_21 = arith.constant 0 : i32
    %48 = vector.broadcast %c0_i32_21 : i32 to vector<8x1xi32>
    %49 = arith.cmpi ne, %47, %48 : vector<8x1xi32>
    %cst_22 = arith.constant 0.899999976 : f32
    %cst_23 = arith.constant 0.000000e+00 : f32
    %50 = vector.broadcast %cst_22 : f32 to vector<8x1xf32>
    %51 = vector.broadcast %cst_23 : f32 to vector<8x1xf32>
    %52 = arith.select %49, %50, %51 : vector<8x1xi1>, vector<8x1xf32>
    %53 = vector.broadcast %47 : vector<8x1xi32> to vector<8x200xi32>
    %54 = arith.cmpi eq, %3, %53 : vector<8x200xi32>
    %55 = vector.shape_cast %52 : vector<8x1xf32> to vector<8x1xf32>
    %56 = vector.broadcast %55 : vector<8x1xf32> to vector<8x200xf32>
    %57 = arith.select %54, %56, %8 : vector<8x200xi1>, vector<8x200xf32>
    %58 = arith.mulf %57, %46 : vector<8x200xf32>
    %cst_24 = arith.constant 0.000000e+00 : f32
    %59 = vector.shape_cast %49 : vector<8x1xi1> to vector<8x1xi1>
    %60 = vector.broadcast %59 : vector<8x1xi1> to vector<8x200xi1>
    %61 = vector.broadcast %cst_24 : f32 to vector<8x200xf32>
    %62 = arith.select %60, %58, %61 : vector<8x200xi1>, vector<8x200xf32>
    %63 = arith.addf %45, %62 : vector<8x200xf32>
    %c24 = arith.constant 24 : index
    %c0_25 = arith.constant 0 : index
    %64 = vector.load %arg1[%c24, %c0_25] : memref<48x200xf32, #tpu.memory_space<vmem>>, vector<8x200xf32>
    %c24_26 = arith.constant 24 : index
    %c0_27 = arith.constant 0 : index
    %65 = vector.load %arg2[%c24_26, %c0_27] : memref<48x1xi32, #tpu.memory_space<vmem>>, vector<8x1xi32>
    %c0_i32_28 = arith.constant 0 : i32
    %66 = vector.broadcast %c0_i32_28 : i32 to vector<8x1xi32>
    %67 = arith.cmpi ne, %65, %66 : vector<8x1xi32>
    %cst_29 = arith.constant 0.899999976 : f32
    %cst_30 = arith.constant 0.000000e+00 : f32
    %68 = vector.broadcast %cst_29 : f32 to vector<8x1xf32>
    %69 = vector.broadcast %cst_30 : f32 to vector<8x1xf32>
    %70 = arith.select %67, %68, %69 : vector<8x1xi1>, vector<8x1xf32>
    %71 = vector.broadcast %65 : vector<8x1xi32> to vector<8x200xi32>
    %72 = arith.cmpi eq, %3, %71 : vector<8x200xi32>
    %73 = vector.shape_cast %70 : vector<8x1xf32> to vector<8x1xf32>
    %74 = vector.broadcast %73 : vector<8x1xf32> to vector<8x200xf32>
    %75 = arith.select %72, %74, %8 : vector<8x200xi1>, vector<8x200xf32>
    %76 = arith.mulf %75, %64 : vector<8x200xf32>
    %cst_31 = arith.constant 0.000000e+00 : f32
    %77 = vector.shape_cast %67 : vector<8x1xi1> to vector<8x1xi1>
    %78 = vector.broadcast %77 : vector<8x1xi1> to vector<8x200xi1>
    %79 = vector.broadcast %cst_31 : f32 to vector<8x200xf32>
    %80 = arith.select %78, %76, %79 : vector<8x200xi1>, vector<8x200xf32>
    %81 = arith.addf %63, %80 : vector<8x200xf32>
    %c32 = arith.constant 32 : index
    %c0_32 = arith.constant 0 : index
    %82 = vector.load %arg1[%c32, %c0_32] : memref<48x200xf32, #tpu.memory_space<vmem>>, vector<8x200xf32>
    %c32_33 = arith.constant 32 : index
    %c0_34 = arith.constant 0 : index
    %83 = vector.load %arg2[%c32_33, %c0_34] : memref<48x1xi32, #tpu.memory_space<vmem>>, vector<8x1xi32>
    %c0_i32_35 = arith.constant 0 : i32
    %84 = vector.broadcast %c0_i32_35 : i32 to vector<8x1xi32>
    %85 = arith.cmpi ne, %83, %84 : vector<8x1xi32>
    %cst_36 = arith.constant 0.899999976 : f32
    %cst_37 = arith.constant 0.000000e+00 : f32
    %86 = vector.broadcast %cst_36 : f32 to vector<8x1xf32>
    %87 = vector.broadcast %cst_37 : f32 to vector<8x1xf32>
    %88 = arith.select %85, %86, %87 : vector<8x1xi1>, vector<8x1xf32>
    %89 = vector.broadcast %83 : vector<8x1xi32> to vector<8x200xi32>
    %90 = arith.cmpi eq, %3, %89 : vector<8x200xi32>
    %91 = vector.shape_cast %88 : vector<8x1xf32> to vector<8x1xf32>
    %92 = vector.broadcast %91 : vector<8x1xf32> to vector<8x200xf32>
    %93 = arith.select %90, %92, %8 : vector<8x200xi1>, vector<8x200xf32>
    %94 = arith.mulf %93, %82 : vector<8x200xf32>
    %cst_38 = arith.constant 0.000000e+00 : f32
    %95 = vector.shape_cast %85 : vector<8x1xi1> to vector<8x1xi1>
    %96 = vector.broadcast %95 : vector<8x1xi1> to vector<8x200xi1>
    %97 = vector.broadcast %cst_38 : f32 to vector<8x200xf32>
    %98 = arith.select %96, %94, %97 : vector<8x200xi1>, vector<8x200xf32>
    %99 = arith.addf %81, %98 : vector<8x200xf32>
    %c40 = arith.constant 40 : index
    %c0_39 = arith.constant 0 : index
    %100 = vector.load %arg1[%c40, %c0_39] : memref<48x200xf32, #tpu.memory_space<vmem>>, vector<8x200xf32>
    %c40_40 = arith.constant 40 : index
    %c0_41 = arith.constant 0 : index
    %101 = vector.load %arg2[%c40_40, %c0_41] : memref<48x1xi32, #tpu.memory_space<vmem>>, vector<8x1xi32>
    %c0_i32_42 = arith.constant 0 : i32
    %102 = vector.broadcast %c0_i32_42 : i32 to vector<8x1xi32>
    %103 = arith.cmpi ne, %101, %102 : vector<8x1xi32>
    %cst_43 = arith.constant 0.899999976 : f32
    %cst_44 = arith.constant 0.000000e+00 : f32
    %104 = vector.broadcast %cst_43 : f32 to vector<8x1xf32>
    %105 = vector.broadcast %cst_44 : f32 to vector<8x1xf32>
    %106 = arith.select %103, %104, %105 : vector<8x1xi1>, vector<8x1xf32>
    %107 = vector.broadcast %101 : vector<8x1xi32> to vector<8x200xi32>
    %108 = arith.cmpi eq, %3, %107 : vector<8x200xi32>
    %109 = vector.shape_cast %106 : vector<8x1xf32> to vector<8x1xf32>
    %110 = vector.broadcast %109 : vector<8x1xf32> to vector<8x200xf32>
    %111 = arith.select %108, %110, %8 : vector<8x200xi1>, vector<8x200xf32>
    %112 = arith.mulf %111, %100 : vector<8x200xf32>
    %cst_45 = arith.constant 0.000000e+00 : f32
    %113 = vector.shape_cast %103 : vector<8x1xi1> to vector<8x1xi1>
    %114 = vector.broadcast %113 : vector<8x1xi1> to vector<8x200xi1>
    %115 = vector.broadcast %cst_45 : f32 to vector<8x200xf32>
    %116 = arith.select %114, %112, %115 : vector<8x200xi1>, vector<8x200xf32>
    %117 = arith.addf %99, %116 : vector<8x200xf32>
    %118 = arith.addf %0, %117 : vector<8x200xf32>
    %c0_46 = arith.constant 0 : index
    %c0_47 = arith.constant 0 : index
    %119 = vector.load %arg3[%c0_46, %c0_47] : memref<8x200xf32, #tpu.memory_space<vmem>>, vector<8x200xf32>
    tpu.vector_store %arg3[%c0_46, %c0_47], %118 {strides = array<i32>} : memref<8x200xf32, #tpu.memory_space<vmem>>, vector<8x200xf32>,
    return
  }
  func.func @transform_0(%arg0: i32) -> (i32, i32) {
    %c0_i32 = arith.constant 0 : i32
    %c0_i32_0 = arith.constant 0 : i32
    return %arg0, %c0_i32 : i32, i32
  }
  func.func @transform_1(%arg0: i32) -> (i32, i32) {
    %c0_i32 = arith.constant 0 : i32
    %c0_i32_0 = arith.constant 0 : i32
    return %arg0, %c0_i32 : i32, i32
  }
  func.func @transform_2(%arg0: i32) -> (i32, i32) {
    %c0_i32 = arith.constant 0 : i32
    %c0_i32_0 = arith.constant 0 : i32
    return %arg0, %c0_i32 : i32, i32
  }
}

</mosaic_0001>

<llo_original>
// kernel: tpu_custom_call.1
$region0: #{tpu_custom_call.1}
  #allocation0 [shape = 'u32[]', space=smem, size = 0x4, offset = 0x4, fixed_abs, tag = 'smem constant byte address 0x4 - core index']
  #allocation1 [shape = 'u32[144,128]{1,0:T(1,128)}', space=vmem, size = 0x12000, scoped, tag = 'internal scratch']
  %s0 = inlined_call_operand.hbm [shape: f32[50,200], index: 0, kind: input, shape index: {}]
  %s1 = inlined_call_operand.vmem [shape: s32[96,1], index: 1, kind: input, shape index: {}]
  %s2 = inlined_call_operand.hbm [shape: f32[16,200], index: 2, kind: output, shape index: {}]
  %s3 = sld [smem:[#allocation0]]
  $region45: #{tpu_custom_call.1} parent=0
    _
  %s5 = ssub.s32 1, %s3
  %s6 = scalar_select 0, %s5, %s3
  $region1: #{tpu_custom_call.1} parent=0
    #allocation2 [shape = 'u8[98304]{0}', space=vmem, size = 0x18000, scoped, tag = 'input window, operand 0']
    #allocation3 [shape = 's32[2]{0}', space=sflag, size = 0x8, scoped, tag = 'scoped memory for tpu_custom_call.1']
    #allocation4 [shape = 's32[2]{0}', space=sflag, size = 0x8, scoped, tag = 'scoped memory for tpu_custom_call.1']
    #allocation5 [shape = 'u8[16384]{0}', space=vmem, size = 0x4000, scoped, tag = 'output window, operand 0']
    %7 = vsyncpa [#allocation3], 0
    %s8 = scalar_lea.sflag [#allocation3], 1
    %9 = vsyncpa %s8, 0
    %10 = vsyncpa [#allocation4], 0
    %s11 = scalar_lea.sflag [#allocation4], 1
    %12 = vsyncpa %s11, 0
    loop: start=0, step=1, limit=4
    $region2: #{tpu_custom_call.1} parent=1 // loop_pre_header
      _
    $region3: #{tpu_custom_call.1} parent=1 // loop_header
      %s14 = sphi 0, %s18
      %p15 = scmp.ge.s32.totalorder %s14, 4
      %s24 = sphi 0, %s26
      %s27 = sphi 0, %s24
      %s28 = sphi 0, %s27
      %s44 = sphi 0, %s28
      %s50 = sphi 0, %s52
      %s53 = sphi 0, %s50
      %s54 = sphi 0, %s53
      %s70 = sphi 0, %s54
      %s76 = sphi 0, %s78
      %s79 = sphi 0, %s76
      %s80 = sphi 0, %s79
      %s96 = sphi 0, %s80
    $region4: #{tpu_custom_call.1} parent=1 // loop_header_branch
      %17 = sbr.rel (%p15) target = $region8
    $region5: #{tpu_custom_call.1} parent=1 // loop_body
      %s19 = ssub.s32 %s14, 1
      %s20 = ssub.s32 %s14, 2
      %s21 = sadd.s32 %s14, 1
      %s22 = ssub.s32 %s14, %s21
      %p23 = scmp.eq.s32.totalorder %s22, 0
      %s25 = sadd.s32 %s24, 1
      %s26 = scalar_select %p23, %s24, %s25
      %p29 = pneg %p23
      %p30 = scmp.eq.s32.totalorder %s14, 1
      %p31 = por %p29, %p30
      %p32 = scmp.ne.s32.totalorder %s24, %s27
      %p33 = scmp.eq.s32.totalorder %s14, 0
      %p34 = por %p32, %p33
      %p35 = scmp.ne.s32.totalorder %s24, %s27
      %p36 = scmp.eq.s32.totalorder %s19, 1
      %p37 = por %p35, %p36
      %p38 = scmp.ne.s32.totalorder %s27, %s28
      %p39 = scmp.eq.s32.totalorder %s19, 0
      %p40 = por %p38, %p39
      %p41 = scmp.ne.s32.totalorder %s27, %s28
      %p42 = scmp.eq.s32.totalorder %s20, 1
      %p43 = por %p41, %p42
      %p45 = scmp.ne.s32.totalorder %s28, %s44
      %p46 = scmp.eq.s32.totalorder %s20, 0
      %p47 = por %p45, %p46
      %s48 = ssub.s32 %s14, %s21
      %p49 = scmp.eq.s32.totalorder %s48, 0
      %s51 = sadd.s32 %s50, 1
      %s52 = scalar_select %p49, %s50, %s51
      %p55 = pneg %p49
      %p56 = scmp.eq.s32.totalorder %s14, 1
      %p57 = por %p55, %p56
      %p58 = scmp.ne.s32.totalorder %s50, %s53
      %p59 = scmp.eq.s32.totalorder %s14, 0
      %p60 = por %p58, %p59
      %p61 = scmp.ne.s32.totalorder %s50, %s53
      %p62 = scmp.eq.s32.totalorder %s19, 1
      %p63 = por %p61, %p62
      %p64 = scmp.ne.s32.totalorder %s53, %s54
      %p65 = scmp.eq.s32.totalorder %s19, 0
      %p66 = por %p64, %p65
      %p67 = scmp.ne.s32.totalorder %s53, %s54
      %p68 = scmp.eq.s32.totalorder %s20, 1
      %p69 = por %p67, %p68
      %p71 = scmp.ne.s32.totalorder %s54, %s70
      %p72 = scmp.eq.s32.totalorder %s20, 0
      %p73 = por %p71, %p72
      %s74 = ssub.s32 %s14, %s21
      %p75 = scmp.eq.s32.totalorder %s74, 0
      %s77 = sadd.s32 %s76, 1
      %s78 = scalar_select %p75, %s76, %s77
      %p81 = pneg %p75
      %p82 = scmp.eq.s32.totalorder %s14, 1
      %p83 = por %p81, %p82
      %p84 = scmp.ne.s32.totalorder %s76, %s79
      %p85 = scmp.eq.s32.totalorder %s14, 0
      %p86 = por %p84, %p85
      %p87 = scmp.ne.s32.totalorder %s76, %s79
      %p88 = scmp.eq.s32.totalorder %s19, 1
      %p89 = por %p87, %p88
      %p90 = scmp.ne.s32.totalorder %s79, %s80
      %p91 = scmp.eq.s32.totalorder %s19, 0
      %p92 = por %p90, %p91
      %p93 = scmp.ne.s32.totalorder %s79, %s80
      %p94 = scmp.eq.s32.totalorder %s20, 1
      %p95 = por %p93, %p94
      %p97 = scmp.ne.s32.totalorder %s80, %s96
      %p98 = scmp.eq.s32.totalorder %s20, 0
      %p99 = por %p97, %p98
      %p100 = scmp.le.s32.totalorder 1, %s14
      %p101 = scmp.lt.s32.totalorder %s14, 3
      %p102 = pnand %p100, %p101
      %p103 = pneg %p102
      // Predicated region
      $region9: #{tpu_custom_call.1} parent=5 // pred_check
        _
      $region10: #{tpu_custom_call.1} parent=5 // pred_check_branch
        %105 = sbr.rel (%p102) target = $region12
      $region11: #{tpu_custom_call.1} parent=5 // pred_region
        %s106 = ssub.s32 %s14, 1
      $region12: #{tpu_custom_call.1} parent=5 // pred_fallthru
        _
      %p107 = scmp.lt.s32.totalorder %s14, 2
      // Predicated region
      $region13: #{tpu_custom_call.1} parent=5 // pred_check
        %p108 = pneg %p107
      $region14: #{tpu_custom_call.1} parent=5 // pred_check_branch
        %110 = sbr.rel (%p108) target = $region16
      $region15: #{tpu_custom_call.1} parent=5 // pred_region
        // Predicated region
        $region17: #{tpu_custom_call.1} parent=15 // pred_check
          %p111 = pneg %p34
        $region18: #{tpu_custom_call.1} parent=15 // pred_check_branch
          %113 = sbr.rel (%p111) target = $region20
        $region19: #{tpu_custom_call.1} parent=15 // pred_region
          %s114 = sand.u32 %s24, 1
          %s115 = scalar_lea.sflag [#allocation3], %s114
          %s116 = sand.u32 %s24, 1
          %s117 = smul.addr %s116, 96
          %s118 = scalar_lea.vmem [#allocation2], %s117
          %s119 = smul.u32 6, %s14
          %s120 = ssub.s32 7, %s119
          %p121 = scmp.lt.s32.totalorder %s120, 6
          %s122 = scalar_select %p121, %s120, 6
          %s123 = smul.u32 128, %s122
          %s124 = smul.u32 %s123, 2
          %s126 = ssub.s32 1536, %s124
          %127 = vsyncadd %s115, %s126
          %p128 = scmp.ne.s32.totalorder 0, %s124
          %s129 = smul.addr %s119, 2
          %s130 = smul.addr %s129, 128
          %s131 = scalar_lea.hbm %s0, %s130
          %s132 = smul.u32 16, %s122
          %s133 = sshll.u32 %s118, 4
          %s134 = int_to_ptr.vmem [resolvable:$true] %s133
          %s135 = sshll.u32 %s132, 4
          %139 = dma.hbm_to_vmem [thread:$0]  (%p128), %s131, %s135, %s134, %s115, 256, 256, 16
        $region20: #{tpu_custom_call.1} parent=15 // pred_fallthru
          _
        // Predicated region
        $region21: #{tpu_custom_call.1} parent=15 // pred_check
          %p140 = pneg %p60
        $region22: #{tpu_custom_call.1} parent=15 // pred_check_branch
          %142 = sbr.rel (%p140) target = $region24
        $region23: #{tpu_custom_call.1} parent=15 // pred_region
          %s143 = smul.u32 6, %s14
          %p144 = scmp.lt.s32.totalorder %s143, 11
          %s145 = scalar_select %p144, %s143, 11
          %s146 = smul.addr %s145, 8
          %s147 = scalar_lea.vmem %s1, %s146
          %s148 = smul.u32 6, %s14
        $region24: #{tpu_custom_call.1} parent=15 // pred_fallthru
          _
      $region16: #{tpu_custom_call.1} parent=5 // pred_fallthru
        _
      %p149 = scmp.le.s32.totalorder 1, %s14
      %p150 = scmp.lt.s32.totalorder %s14, 3
      %p151 = pnand %p149, %p150
      %p152 = pneg %p151
      // Predicated region
      $region25: #{tpu_custom_call.1} parent=5 // pred_check
        _
      $region26: #{tpu_custom_call.1} parent=5 // pred_check_branch
        %154 = sbr.rel (%p151) target = $region28
      $region27: #{tpu_custom_call.1} parent=5 // pred_region
        %s155 = ssub.s32 %s14, 1
        %s156 = sand.u32 %s27, 1
        %s157 = scalar_lea.sflag [#allocation3], %s156
        %s158 = sand.u32 %s27, 1
        %s159 = smul.addr %s158, 96
        %s160 = scalar_lea.vmem [#allocation2], %s159
        // Predicated region
        $region29: #{tpu_custom_call.1} parent=27 // pred_check
          %p161 = pneg %p40
        $region30: #{tpu_custom_call.1} parent=27 // pred_check_branch
          %163 = sbr.rel (%p161) target = $region32
        $region31: #{tpu_custom_call.1} parent=27 // pred_region
          %164 = dma.done %s157, 1536
        $region32: #{tpu_custom_call.1} parent=27 // pred_fallthru
          _
        %s165 = sand.u32 %s27, 1
        %s166 = scalar_lea.sflag [#allocation3], %s165
        %s167 = sand.u32 %s27, 1
        %s168 = smul.addr %s167, 96
        %s169 = scalar_lea.vmem [#allocation2], %s168
        %p170 = pneg %p40
        %p171 = pneg %p37
        %s172 = smul.u32 6, %s19
        %p173 = scmp.lt.s32.totalorder %s172, 11
        %s174 = scalar_select %p173, %s172, 11
        %s175 = smul.addr %s174, 8
        %s176 = scalar_lea.vmem %s1, %s175
        %p177 = pneg %p66
        %p178 = pneg %p63
        %p179 = pneg %p92
        %p180 = pneg %p89
        %s181 = sand.u32 %s79, 1
        %s182 = scalar_lea.sflag [#allocation4], %s181
        %s183 = sand.u32 %s79, 1
        %s184 = smul.addr %s183, 16
        %s185 = scalar_lea.vmem [#allocation5], %s184
        %s186 = smul.u32 6, %s19
        %s187 = ssub.s32 7, %s186
        %p188 = scmp.lt.s32.totalorder %s187, 6
        %s189 = scalar_select %p188, %s187, 6
        %s190 = smul.u32 128, %s189
        %s191 = smul.u32 %s190, 2
        %s192 = smul.u32 6, %s19
        %p193 = scmp.lt.s32.totalorder %s192, 11
        %s194 = scalar_select %p193, %s192, 11
        %s195 = smul.addr %s194, 8
        %s196 = scalar_lea.vmem %s1, %s195
        %s197 = smul.u32 6, %s19
        %v198 = vlaneseq
        %v199 = vand.u32 %v198, 127
        %v200 = vadd.s32 %v199, 128
        %vm201 = vcmp.eq.s32.totalorder %v199, 0
        %vm202 = vcmp.eq.s32.totalorder %v200, 0
        %v203 = vsel %vm201, 0.0, 0.0005050505
        %v204 = vsel %vm202, 0.0, 0.0005050505
        %v205 = vld [vmem:[%s160] sm:$0xff]
        %v206 = vld [vmem:[%s160 + $0x8] sm:$0xff]
        %v207 = vld [vmem:[%s196] sm:$0xff]
        %vm208 = vcmp.ne.s32.totalorder %v207, 0
        %v209 = vsel %vm208, 0.9, 0.0
        %210 = vset.pattern.permute.xlu0 0
        %211 = vperm.xlu0 %210, %v207
        %v212 = vpop.permute.xlu0 %211
        %vm213 = vcmp.eq.s32.totalorder %v199, %v212
        %vm214 = vcmp.eq.s32.totalorder %v200, %v212
        %216 = vset.pattern.permute.xlu0 0
        %217 = vperm.xlu0 %216, %v209
        %v218 = vpop.permute.xlu0 %217
        %v220 = vsel %vm213, %v218, %v203
        %v221 = vsel %vm214, %v218, %v204
        %v222 = vmul.f32 %v220, %v205
        %v223 = vmul.f32 %v221, %v206
        %v224 = vsel %vm208, 1, 0
        %225 = vset.pattern.permute.xlu0 0
        %226 = vperm.xlu0 %225, %v224
        %v227 = vpop.permute.xlu0 %226
        %vm228 = vcmp.eq.s32.totalorder %v227, 1
        %v229 = vsel %vm228, %v222, 0.0
        %v230 = vsel %vm228, %v223, 0.0
        %v231 = vadd.f32 %v229, 0.0
        %v232 = vadd.f32 %v230, 0.0
        %v233 = vld [vmem:[%s160 + $0x10] sm:$0xff]
        %v234 = vld [vmem:[%s160 + $0x18] sm:$0xff]
        %v235 = vld [vmem:[%s196 + $0x8] sm:$0xff]
        %vm236 = vcmp.ne.s32.totalorder %v235, 0
        %v237 = vsel %vm236, 0.9, 0.0
        %238 = vset.pattern.permute.xlu0 0
        %239 = vperm.xlu0 %238, %v235
        %v240 = vpop.permute.xlu0 %239
        %vm241 = vcmp.eq.s32.totalorder %v199, %v240
        %vm242 = vcmp.eq.s32.totalorder %v200, %v240
        %244 = vset.pattern.permute.xlu0 0
        %245 = vperm.xlu0 %244, %v237
        %v246 = vpop.permute.xlu0 %245
        %v248 = vsel %vm241, %v246, %v203
        %v249 = vsel %vm242, %v246, %v204
        %v250 = vmul.f32 %v248, %v233
        %v251 = vmul.f32 %v249, %v234
        %v252 = vsel %vm236, 1, 0
        %253 = vset.pattern.permute.xlu0 0
        %254 = vperm.xlu0 %253, %v252
        %v255 = vpop.permute.xlu0 %254
        %vm256 = vcmp.eq.s32.totalorder %v255, 1
        %v257 = vsel %vm256, %v250, 0.0
        %v258 = vsel %vm256, %v251, 0.0
        %v259 = vadd.f32 %v231, %v257
        %v260 = vadd.f32 %v232, %v258
        %v261 = vld [vmem:[%s160 + $0x20] sm:$0xff]
        %v262 = vld [vmem:[%s160 + $0x28] sm:$0xff]
        %v263 = vld [vmem:[%s196 + $0x10] sm:$0xff]
        %vm264 = vcmp.ne.s32.totalorder %v263, 0
        %v265 = vsel %vm264, 0.9, 0.0
        %266 = vset.pattern.permute.xlu0 0
        %267 = vperm.xlu0 %266, %v263
        %v268 = vpop.permute.xlu0 %267
        %vm269 = vcmp.eq.s32.totalorder %v199, %v268
        %vm270 = vcmp.eq.s32.totalorder %v200, %v268
        %272 = vset.pattern.permute.xlu0 0
        %273 = vperm.xlu0 %272, %v265
        %v274 = vpop.permute.xlu0 %273
        %v276 = vsel %vm269, %v274, %v203
        %v277 = vsel %vm270, %v274, %v204
        %v278 = vmul.f32 %v276, %v261
        %v279 = vmul.f32 %v277, %v262
        %v280 = vsel %vm264, 1, 0
        %281 = vset.pattern.permute.xlu0 0
        %282 = vperm.xlu0 %281, %v280
        %v283 = vpop.permute.xlu0 %282
        %vm284 = vcmp.eq.s32.totalorder %v283, 1
        %v285 = vsel %vm284, %v278, 0.0
        %v286 = vsel %vm284, %v279, 0.0
        %v287 = vadd.f32 %v259, %v285
        %v288 = vadd.f32 %v260, %v286
        %v289 = vld [vmem:[%s160 + $0x30] sm:$0xff]
        %v290 = vld [vmem:[%s160 + $0x38] sm:$0xff]
        %v291 = vld [vmem:[%s196 + $0x18] sm:$0xff]
        %vm292 = vcmp.ne.s32.totalorder %v291, 0
        %v293 = vsel %vm292, 0.9, 0.0
        %294 = vset.pattern.permute.xlu0 0
        %295 = vperm.xlu0 %294, %v291
        %v296 = vpop.permute.xlu0 %295
        %vm297 = vcmp.eq.s32.totalorder %v199, %v296
        %vm298 = vcmp.eq.s32.totalorder %v200, %v296
        %300 = vset.pattern.permute.xlu0 0
        %301 = vperm.xlu0 %300, %v293
        %v302 = vpop.permute.xlu0 %301
        %v304 = vsel %vm297, %v302, %v203
        %v305 = vsel %vm298, %v302, %v204
        %v306 = vmul.f32 %v304, %v289
        %v307 = vmul.f32 %v305, %v290
        %v308 = vsel %vm292, 1, 0
        %309 = vset.pattern.permute.xlu0 0
        %310 = vperm.xlu0 %309, %v308
        %v311 = vpop.permute.xlu0 %310
        %vm312 = vcmp.eq.s32.totalorder %v311, 1
        %v313 = vsel %vm312, %v306, 0.0
        %v314 = vsel %vm312, %v307, 0.0
        %v315 = vadd.f32 %v287, %v313
        %v316 = vadd.f32 %v288, %v314
        %v317 = vld [vmem:[%s160 + $0x40] sm:$0xff]
        %v318 = vld [vmem:[%s160 + $0x48] sm:$0xff]
        %v319 = vld [vmem:[%s196 + $0x20] sm:$0xff]
        %vm320 = vcmp.ne.s32.totalorder %v319, 0
        %v321 = vsel %vm320, 0.9, 0.0
        %322 = vset.pattern.permute.xlu0 0
        %323 = vperm.xlu0 %322, %v319
        %v324 = vpop.permute.xlu0 %323
        %vm325 = vcmp.eq.s32.totalorder %v199, %v324
        %vm326 = vcmp.eq.s32.totalorder %v200, %v324
        %328 = vset.pattern.permute.xlu0 0
        %329 = vperm.xlu0 %328, %v321
        %v330 = vpop.permute.xlu0 %329
        %v332 = vsel %vm325, %v330, %v203
        %v333 = vsel %vm326, %v330, %v204
        %v334 = vmul.f32 %v332, %v317
        %v335 = vmul.f32 %v333, %v318
        %v336 = vsel %vm320, 1, 0
        %337 = vset.pattern.permute.xlu0 0
        %338 = vperm.xlu0 %337, %v336
        %v339 = vpop.permute.xlu0 %338
        %vm340 = vcmp.eq.s32.totalorder %v339, 1
        %v341 = vsel %vm340, %v334, 0.0
        %v342 = vsel %vm340, %v335, 0.0
        %v343 = vadd.f32 %v315, %v341
        %v344 = vadd.f32 %v316, %v342
        %v345 = vld [vmem:[%s160 + $0x50] sm:$0xff]
        %v346 = vld [vmem:[%s160 + $0x58] sm:$0xff]
        %v347 = vld [vmem:[%s196 + $0x28] sm:$0xff]
        %vm348 = vcmp.ne.s32.totalorder %v347, 0
        %v349 = vsel %vm348, 0.9, 0.0
        %350 = vset.pattern.permute.xlu0 0
        %351 = vperm.xlu0 %350, %v347
        %v352 = vpop.permute.xlu0 %351
        %vm353 = vcmp.eq.s32.totalorder %v199, %v352
        %vm354 = vcmp.eq.s32.totalorder %v200, %v352
        %356 = vset.pattern.permute.xlu0 0
        %357 = vperm.xlu0 %356, %v349
        %v358 = vpop.permute.xlu0 %357
        %v360 = vsel %vm353, %v358, %v203
        %v361 = vsel %vm354, %v358, %v204
        %v362 = vmul.f32 %v360, %v345
        %v363 = vmul.f32 %v361, %v346
        %v364 = vsel %vm348, 1, 0
        %365 = vset.pattern.permute.xlu0 0
        %366 = vperm.xlu0 %365, %v364
        %v367 = vpop.permute.xlu0 %366
        %vm368 = vcmp.eq.s32.totalorder %v367, 1
        %v369 = vsel %vm368, %v362, 0.0
        %v370 = vsel %vm368, %v363, 0.0
        %v371 = vadd.f32 %v343, %v369
        %v372 = vadd.f32 %v344, %v370
        %v373 = vadd.f32 %v371, 0.0
        %v374 = vadd.f32 %v372, 0.0
        %375 = vst [vmem:[%s185] sm:$0xff] %v373
        %vm376 = vcmask 588800
        %377 = vst.msk [vmem:[%s185 + $0x8] sm:$0xff] %vm376, %v374
        %s378 = sand.u32 %s79, 1
        %s379 = scalar_lea.sflag [#allocation4], %s378
        %s380 = sand.u32 %s79, 1
        %s381 = smul.addr %s380, 16
        %s382 = scalar_lea.vmem [#allocation5], %s381
        // Predicated region
        $region33: #{tpu_custom_call.1} parent=27 // pred_check
          %p383 = pneg %p89
        $region34: #{tpu_custom_call.1} parent=27 // pred_check_branch
          %385 = sbr.rel (%p383) target = $region36
        $region35: #{tpu_custom_call.1} parent=27 // pred_region
          %s387 = ssub.s32 256, 256
          %388 = vsyncadd %s379, %s387
          %s389 = smul.addr %s19, 2
          %s390 = smul.addr %s389, 128
          %s391 = scalar_lea.hbm %s2, %s390
          %s393 = sshll.u32 %s382, 4
          %s394 = int_to_ptr.vmem [resolvable:$true] %s393
          %396 = dma.vmem_to_hbm [thread:$0]  %s394, 256, %s391, %s379
        $region36: #{tpu_custom_call.1} parent=27 // pred_fallthru
          _
      $region28: #{tpu_custom_call.1} parent=5 // pred_fallthru
        _
      %p397 = scmp.le.s32.totalorder 2, %s14
      // Predicated region
      $region37: #{tpu_custom_call.1} parent=5 // pred_check
        %p398 = pneg %p397
      $region38: #{tpu_custom_call.1} parent=5 // pred_check_branch
        %400 = sbr.rel (%p398) target = $region40
      $region39: #{tpu_custom_call.1} parent=5 // pred_region
        %s401 = ssub.s32 %s14, 2
        // Predicated region
        $region41: #{tpu_custom_call.1} parent=39 // pred_check
          %p402 = pneg %p95
        $region42: #{tpu_custom_call.1} parent=39 // pred_check_branch
          %404 = sbr.rel (%p402) target = $region44
        $region43: #{tpu_custom_call.1} parent=39 // pred_region
          %s405 = sand.u32 %s80, 1
          %s406 = scalar_lea.sflag [#allocation4], %s405
          %s407 = sand.u32 %s80, 1
          %s408 = smul.addr %s407, 16
          %s409 = scalar_lea.vmem [#allocation5], %s408
          %410 = dma.done %s406, 256
        $region44: #{tpu_custom_call.1} parent=39 // pred_fallthru
          _
      $region40: #{tpu_custom_call.1} parent=5 // pred_fallthru
        _
    $region6: #{tpu_custom_call.1} parent=1 // loop_footer
      %s18 = sadd.s32 1, %s14
    $region7: #{tpu_custom_call.1} parent=1 // loop_footer_branch
      %13 = sbr.rel target = $region3
    $region8: #{tpu_custom_call.1} parent=1 // loop_exit
      _
    %411 = vsyncpa [#allocation3], 1
    %s412 = scalar_lea.sflag [#allocation3], 1
    %413 = vsyncpa %s412, 1
    %414 = vsyncpa [#allocation4], 1
    %s415 = scalar_lea.sflag [#allocation4], 1
    %416 = vsyncpa %s415, 1

</llo_original>
